<compile_context>
chip_gen: v5e
topology: v5e:2x2
jax: 0.10.0
libtpu: 0.0.40
codegen_flags: <defaults>
</compile_context>

<pallas_src>
import jax
import jax.numpy as jnp
from jax import lax
from jax.experimental import pallas as pl
from jax.experimental.pallas import tpu as pltpu

_EPS = 1e-5
_LANE = 128

# Packed phase-2 parameter offsets (all f32, flattened):
#   w1' (scale-folded): (4,3) at [0:12]   -> w1'[f,k] at 3*f + k
#   shift             : (4,)  at [12:16]
#   w2                : (6,4) at [16:40]  -> w2[j,f] at 16 + 4*j + f
#   b2                : (6,)  at [40:46]
_W1_OFF = 0
_SHIFT_OFF = 12
_W2_OFF = 16
_B2_OFF = 40
_NUM_PACKED2 = 46


def _bn_stats_kernel(w1_ref, x_ref, s_ref):
    """Phase 1: accumulate per-lane sum / sum-of-squares of h = W1 @ x.

    w1_ref : SMEM (12,) flattened w1 (PyTorch (out,in) layout)
    x_ref  : VMEM (3, SB, 128) batch tile, features on the leading axis
    s_ref  : VMEM (8, 128) resident accumulator (per core-split partial)
             rows 0..3 = per-lane sum(h_f), rows 4..7 = per-lane sum(h_f^2)
    """

    @pl.when(pl.program_id(1) == 0)
    def _init():
        s_ref[...] = jnp.zeros_like(s_ref)

    x0 = x_ref[0]
    x1 = x_ref[1]
    x2 = x_ref[2]

    sum_rows = []
    sq_rows = []
    for f in range(4):
        h = (w1_ref[3 * f + 0] * x0
             + w1_ref[3 * f + 1] * x1
             + w1_ref[3 * f + 2] * x2)
        sum_rows.append(jnp.sum(h, axis=0, keepdims=True))
        sq_rows.append(jnp.sum(h * h, axis=0, keepdims=True))

    # Single unmasked (8,128) read-modify-write instead of 8 sublane RMWs.
    s_ref[...] += jnp.concatenate(sum_rows + sq_rows, axis=0)


def _mlp_fwd_kernel(p_ref, x_ref, o_ref):
    """Phase 2: hn = ReLU(w1' @ x + shift) ; y = ReLU(W2 @ hn + b2).

    BN scale/mean are already folded into w1'/shift (computed on host from the
    phase-1 statistics), so the normalize step costs no extra per-element ops.

    p_ref : SMEM (46,) packed params (w1', shift, w2, b2)
    x_ref : VMEM (3, SB, 128) batch tile
    o_ref : VMEM (6, SB, 128) output tile (lane-dense, unmasked stores)
    """
    x0 = x_ref[0]
    x1 = x_ref[1]
    x2 = x_ref[2]

    hn = []
    for f in range(4):
        h = (p_ref[_SHIFT_OFF + f]
             + p_ref[_W1_OFF + 3 * f + 0] * x0
             + p_ref[_W1_OFF + 3 * f + 1] * x1
             + p_ref[_W1_OFF + 3 * f + 2] * x2)
        hn.append(jnp.maximum(h, 0.0))                 # BN (folded) + ReLU

    for j in range(6):
        y = p_ref[_B2_OFF + j] + p_ref[_W2_OFF + 4 * j + 0] * hn[0]
        for f in range(1, 4):
            y = y + p_ref[_W2_OFF + 4 * j + f] * hn[f]
        o_ref[j] = jnp.maximum(y, 0.0)                 # ReLU, full-lane store


def _vmem_limit_bytes(sb):
    """Scoped-VMEM request: enough for double-buffered in/out tiles + temps."""
    tile_in = 3 * sb * _LANE * 4
    tile_out = 6 * sb * _LANE * 4
    tmp = 4 * sb * _LANE * 4
    need = 2 * (tile_in + tile_out) + tmp + (2 << 20)
    # >= 32 MiB covers v5e's 16-MiB default; <= 48 MiB stays safe on v7x (64 MiB phys).
    return int(min(max(need, 32 << 20), 48 << 20))


def temp_mlp_forward(x, params, *, block_sublanes=512):
    """x: (B, 3) float32 -> (B, 6) float32.  params in PyTorch layout."""
    w1, b1, gamma, beta, w2, b2 = params  # b1 unused: cancels under BN mean subtraction
    assert x.ndim == 2 and x.shape[1] == 3, x.shape
    B = x.shape[0]

    # ---- batch-adaptive tile size ----
    sb_pref = max(8, (min(int(block_sublanes), 1024) // 8) * 8)  # cap for v7x VMEM
    nb_needed = -(-B // _LANE)                                   # ceil(B/128)
    nb_needed = ((nb_needed + 7) // 8) * 8                       # round to sublane mult
    SB = min(sb_pref, nb_needed)
    tile = SB * _LANE

    nt = -(-B // tile)                      # tiles needed for the real batch
    ncs = 2 if nt >= 2 else 1               # megacore split for phase 1 (v7x)
    nt_per = -(-nt // ncs)
    nt = ncs * nt_per
    Bp = nt * tile                          # zero-padded batch
    NB = Bp // _LANE

    vmem_limit = _vmem_limit_bytes(SB)

    # Lane-dense (features, batch) layout: pad (B,3)->(Bp,3), transpose, tile.
    # (single fused relayout expression; padded rows are exact zeros)
    xT = jnp.pad(x.astype(jnp.float32), ((0, Bp - B), (0, 0))).T.reshape(3, NB, _LANE)

    w1_flat = w1.reshape(-1).astype(jnp.float32)       # (12,)

    # ---- phase 1: full-batch BN statistics (resident accumulator per split) ----
    stats = pl.pallas_call(
        _bn_stats_kernel,
        out_shape=jax.ShapeDtypeStruct((ncs, 8, _LANE), jnp.float32),
        grid=(ncs, nt_per),
        in_specs=[
            pl.BlockSpec(memory_space=pltpu.MemorySpace.SMEM),
            pl.BlockSpec((3, SB, _LANE), lambda c, i: (0, c * nt_per + i, 0)),
        ],
        out_specs=pl.BlockSpec((None, 8, _LANE), lambda c, i: (c, 0, 0)),
        compiler_params=pltpu.CompilerParams(
            dimension_semantics=("parallel", "arbitrary"),
            vmem_limit_bytes=vmem_limit),
        cost_estimate=pl.CostEstimate(
            flops=Bp * (2 * 3 * 4 + 3 * 4),
            transcendentals=0,
            bytes_accessed=3 * Bp * 4 + ncs * 8 * _LANE * 4,
        ),
    )(w1_flat, xT)

    # ---- tiny host finalize: fold BN into w1'/shift (removes per-elem BN FMA) ----
    st = jnp.sum(stats, axis=0)                          # (8,128) sum of core partials
    sums = jnp.sum(st[0:4, :], axis=1)                   # (4,)
    sumsq = jnp.sum(st[4:8, :], axis=1)                  # (4,)
    mean = sums / B
    var = jnp.maximum(sumsq / B - mean * mean, 0.0)      # biased (training-mode) variance
    scale = gamma.reshape(-1).astype(jnp.float32) * lax.rsqrt(var + _EPS)
    shift = beta.reshape(-1).astype(jnp.float32) - mean * scale
    w1_folded = (w1.astype(jnp.float32) * scale[:, None]).reshape(-1)   # (12,)
    p2 = jnp.concatenate(
        [w1_folded, shift,
         w2.reshape(-1).astype(jnp.float32),
         b2.reshape(-1).astype(jnp.float32)])
    assert p2.shape == (_NUM_PACKED2,)

    # ---- phase 2: (folded) BN + ReLU + fc2 + ReLU, lane-dense tiled output ----
    outT = pl.pallas_call(
        _mlp_fwd_kernel,
        out_shape=jax.ShapeDtypeStruct((6, NB, _LANE), jnp.float32),
        grid=(nt,),
        in_specs=[
            pl.BlockSpec(memory_space=pltpu.MemorySpace.SMEM),
            pl.BlockSpec((3, SB, _LANE), lambda i: (0, i, 0)),
        ],
        out_specs=pl.BlockSpec((6, SB, _LANE), lambda i: (0, i, 0)),
        compiler_params=pltpu.CompilerParams(
            dimension_semantics=("parallel",),           # megacore-shardable
            vmem_limit_bytes=vmem_limit),
        cost_estimate=pl.CostEstimate(
            flops=2 * Bp * (3 * 4 + 4 * 6),
            transcendentals=0,
            bytes_accessed=(3 + 6) * Bp * 4,
        ),
    )(p2, xT)

    # Slice padding away before the (cheap) transpose back to (B, 6).
    return outT.reshape(6, Bp)[:, :B].T


def init_params(key):
    """PyTorch-layout parameters: w1 (4,3), b1 (4,), gamma/beta (4,), w2 (6,4), b2 (6,)."""
    k1, k2, k3, k4, k5, k6 = jax.random.split(key, 6)
    bound1 = 1.0 / jnp.sqrt(3.0)
    bound2 = 1.0 / jnp.sqrt(4.0)
    w1 = jax.random.uniform(k1, (4, 3), jnp.float32, -bound1, bound1)
    b1 = jax.random.uniform(k2, (4,), jnp.float32, -bound1, bound1)
    # PyTorch defaults are ones/zeros; perturb so the gamma/beta path is exercised.
    gamma = 1.0 + 0.1 * jax.random.normal(k5, (4,), jnp.float32)
    beta = 0.1 * jax.random.normal(k6, (4,), jnp.float32)
    w2 = jax.random.uniform(k3, (6, 4), jnp.float32, -bound2, bound2)
    b2 = jax.random.uniform(k4, (6,), jnp.float32, -bound2, bound2)
    return (w1, b1, gamma, beta, w2, b2)


def reference_forward(x, params):
    """Pure-JAX reference (faithful to the PyTorch module, incl. b1)."""
    w1, b1, gamma, beta, w2, b2 = params
    h = jnp.dot(x, w1.T, precision=lax.Precision.HIGHEST) + b1
    mean = jnp.mean(h, axis=0, keepdims=True)
    var = jnp.mean((h - mean) ** 2, axis=0, keepdims=True)
    h = (h - mean) / jnp.sqrt(var + _EPS) * gamma + beta
    h = jnp.maximum(h, 0.0)
    y = jnp.dot(h, w2.T, precision=lax.Precision.HIGHEST) + b2
    return jnp.maximum(y, 0.0)


if __name__ == "__main__":
    key = jax.random.PRNGKey(0)
    kx, kp = jax.random.split(key)
    params = init_params(kp)

    fwd = jax.jit(temp_mlp_forward, static_argnames=("block_sublanes",))

    # Small, module-consistent shape (adaptive tile -> single small tile).
    B = 8
    x = jax.random.normal(kx, (B, 3), jnp.float32)
    out = jax.block_until_ready(fwd(x, params))
    ref = reference_forward(x, params)
    assert out.shape == (B, 6), out.shape
    assert jnp.allclose(out, ref, atol=5e-5, rtol=5e-5), float(jnp.max(jnp.abs(out - ref)))

    # Larger batch, default (adaptive) tiling: one right-sized tile, no grid waste.
    B2 = 3000
    x2 = jax.random.normal(jax.random.PRNGKey(1), (B2, 3), jnp.float32)
    out2 = jax.block_until_ready(fwd(x2, params))
    ref2 = reference_forward(x2, params)
    assert out2.shape == (B2, 6), out2.shape
    assert jnp.allclose(out2, ref2, atol=5e-5, rtol=5e-5), float(jnp.max(jnp.abs(out2 - ref2)))

    # Same batch with a tiny forced tile: exercises the multi-tile grid, the
    # 2-way phase-1 core split, accumulation across steps and the padding path.
    out3 = jax.block_until_ready(fwd(x2, params, block_sublanes=8))
    assert out3.shape == (B2, 6), out3.shape
    assert jnp.allclose(out3, ref2, atol=5e-5, rtol=5e-5), float(jnp.max(jnp.abs(out3 - ref2)))

    print("KERNEL_OK")
</pallas_src>

<mosaic_0001>
module attributes {stable_mosaic.version = 11 : i64} {
  func.func @_bn_stats_kernel(%arg0: i32, %arg1: i32, %arg2: memref<12xf32, #tpu.memory_space<smem>>, %arg3: memref<3x8x128xf32, #tpu.memory_space<vmem>>, %arg4: memref<1x8x128xf32, #tpu.memory_space<vmem>>) attributes {dimension_semantics = [#tpu.dimension_semantics<parallel>, #tpu.dimension_semantics<arbitrary>], iteration_bounds = array<i64: 1, 1>, scalar_prefetch = 0 : i64, scratch_operands = 0 : i64, tpu.core_type = #tpu.core_type<tc>, window_params = [{transform_indices = @transform_0, window_bounds = array<i64: 12>}, {transform_indices = @transform_1, window_bounds = array<i64: 3, 8, 128>}, {transform_indices = @transform_2, window_bounds = array<i64: 1, 8, 128>}]} {
    %c0_i32 = arith.constant 0 : i32
    %0 = arith.cmpi eq, %arg1, %c0_i32 : i32
    %1 = arith.extui %0 : i1 to i32
    %c0_i32_0 = arith.constant 0 : i32
    %2 = arith.cmpi ne, %1, %c0_i32_0 : i32
    scf.if %2 {
      %cst_23 = arith.constant 0.000000e+00 : f32
      %80 = vector.broadcast %cst_23 : f32 to vector<8x128xf32>
      %c0_24 = arith.constant 0 : index
      %c0_25 = arith.constant 0 : index
      %c0_26 = arith.constant 0 : index
      %81 = vector.load %arg4[%c0_24, %c0_25, %c0_26] : memref<1x8x128xf32, #tpu.memory_space<vmem>>, vector<1x8x128xf32>
      %82 = vector.shape_cast %81 : vector<1x8x128xf32> to vector<8x128xf32>
      %83 = vector.shape_cast %80 : vector<8x128xf32> to vector<1x8x128xf32>
      tpu.vector_store %arg4[%c0_24, %c0_25, %c0_26], %83 {strides = array<i32>} : memref<1x8x128xf32, #tpu.memory_space<vmem>>, vector<1x8x128xf32>,
    } else {
    }
    %c0 = arith.constant 0 : index
    %c0_1 = arith.constant 0 : index
    %c0_2 = arith.constant 0 : index
    %3 = vector.load %arg3[%c0, %c0_1, %c0_2] : memref<3x8x128xf32, #tpu.memory_space<vmem>>, vector<1x8x128xf32>
    %4 = vector.shape_cast %3 : vector<1x8x128xf32> to vector<8x128xf32>
    %c1 = arith.constant 1 : index
    %c0_3 = arith.constant 0 : index
    %c0_4 = arith.constant 0 : index
    %5 = vector.load %arg3[%c1, %c0_3, %c0_4] : memref<3x8x128xf32, #tpu.memory_space<vmem>>, vector<1x8x128xf32>
    %6 = vector.shape_cast %5 : vector<1x8x128xf32> to vector<8x128xf32>
    %c2 = arith.constant 2 : index
    %c0_5 = arith.constant 0 : index
    %c0_6 = arith.constant 0 : index
    %7 = vector.load %arg3[%c2, %c0_5, %c0_6] : memref<3x8x128xf32, #tpu.memory_space<vmem>>, vector<1x8x128xf32>
    %8 = vector.shape_cast %7 : vector<1x8x128xf32> to vector<8x128xf32>
    %c0_7 = arith.constant 0 : index
    %9 = memref.load %arg2[%c0_7] : memref<12xf32, #tpu.memory_space<smem>>
    %10 = vector.broadcast %9 : f32 to vector<8x128xf32>
    %11 = arith.mulf %10, %4 : vector<8x128xf32>
    %c1_8 = arith.constant 1 : index
    %12 = memref.load %arg2[%c1_8] : memref<12xf32, #tpu.memory_space<smem>>
    %13 = vector.broadcast %12 : f32 to vector<8x128xf32>
    %14 = arith.mulf %13, %6 : vector<8x128xf32>
    %15 = arith.addf %11, %14 : vector<8x128xf32>
    %c2_9 = arith.constant 2 : index
    %16 = memref.load %arg2[%c2_9] : memref<12xf32, #tpu.memory_space<smem>>
    %17 = vector.broadcast %16 : f32 to vector<8x128xf32>
    %18 = arith.mulf %17, %8 : vector<8x128xf32>
    %19 = arith.addf %15, %18 : vector<8x128xf32>
    %cst = arith.constant dense<0.000000e+00> : vector<128xf32>
    %20 = vector.multi_reduction <add>, %19, %cst [0] : vector<8x128xf32> to vector<128xf32>
    %21 = vector.shape_cast %20 : vector<128xf32> to vector<1x128xf32>
    %22 = arith.mulf %19, %19 : vector<8x128xf32>
    %cst_10 = arith.constant dense<0.000000e+00> : vector<128xf32>
    %23 = vector.multi_reduction <add>, %22, %cst_10 [0] : vector<8x128xf32> to vector<128xf32>
    %24 = vector.shape_cast %23 : vector<128xf32> to vector<1x128xf32>
    %c3 = arith.constant 3 : index
    %25 = memref.load %arg2[%c3] : memref<12xf32, #tpu.memory_space<smem>>
    %26 = vector.broadcast %25 : f32 to vector<8x128xf32>
    %27 = arith.mulf %26, %4 : vector<8x128xf32>
    %c4 = arith.constant 4 : index
    %28 = memref.load %arg2[%c4] : memref<12xf32, #tpu.memory_space<smem>>
    %29 = vector.broadcast %28 : f32 to vector<8x128xf32>
    %30 = arith.mulf %29, %6 : vector<8x128xf32>
    %31 = arith.addf %27, %30 : vector<8x128xf32>
    %c5 = arith.constant 5 : index
    %32 = memref.load %arg2[%c5] : memref<12xf32, #tpu.memory_space<smem>>
    %33 = vector.broadcast %32 : f32 to vector<8x128xf32>
    %34 = arith.mulf %33, %8 : vector<8x128xf32>
    %35 = arith.addf %31, %34 : vector<8x128xf32>
    %cst_11 = arith.constant dense<0.000000e+00> : vector<128xf32>
    %36 = vector.multi_reduction <add>, %35, %cst_11 [0] : vector<8x128xf32> to vector<128xf32>
    %37 = vector.shape_cast %36 : vector<128xf32> to vector<1x128xf32>
    %38 = arith.mulf %35, %35 : vector<8x128xf32>
    %cst_12 = arith.constant dense<0.000000e+00> : vector<128xf32>
    %39 = vector.multi_reduction <add>, %38, %cst_12 [0] : vector<8x128xf32> to vector<128xf32>
    %40 = vector.shape_cast %39 : vector<128xf32> to vector<1x128xf32>
    %c6 = arith.constant 6 : index
    %41 = memref.load %arg2[%c6] : memref<12xf32, #tpu.memory_space<smem>>
    %42 = vector.broadcast %41 : f32 to vector<8x128xf32>
    %43 = arith.mulf %42, %4 : vector<8x128xf32>
    %c7 = arith.constant 7 : index
    %44 = memref.load %arg2[%c7] : memref<12xf32, #tpu.memory_space<smem>>
    %45 = vector.broadcast %44 : f32 to vector<8x128xf32>
    %46 = arith.mulf %45, %6 : vector<8x128xf32>
    %47 = arith.addf %43, %46 : vector<8x128xf32>
    %c8 = arith.constant 8 : index
    %48 = memref.load %arg2[%c8] : memref<12xf32, #tpu.memory_space<smem>>
    %49 = vector.broadcast %48 : f32 to vector<8x128xf32>
    %50 = arith.mulf %49, %8 : vector<8x128xf32>
    %51 = arith.addf %47, %50 : vector<8x128xf32>
    %cst_13 = arith.constant dense<0.000000e+00> : vector<128xf32>
    %52 = vector.multi_reduction <add>, %51, %cst_13 [0] : vector<8x128xf32> to vector<128xf32>
    %53 = vector.shape_cast %52 : vector<128xf32> to vector<1x128xf32>
    %54 = arith.mulf %51, %51 : vector<8x128xf32>
    %cst_14 = arith.constant dense<0.000000e+00> : vector<128xf32>
    %55 = vector.multi_reduction <add>, %54, %cst_14 [0] : vector<8x128xf32> to vector<128xf32>
    %56 = vector.shape_cast %55 : vector<128xf32> to vector<1x128xf32>
    %c9 = arith.constant 9 : index
    %57 = memref.load %arg2[%c9] : memref<12xf32, #tpu.memory_space<smem>>
    %58 = vector.broadcast %57 : f32 to vector<8x128xf32>
    %59 = arith.mulf %58, %4 : vector<8x128xf32>
    %c10 = arith.constant 10 : index
    %60 = memref.load %arg2[%c10] : memref<12xf32, #tpu.memory_space<smem>>
    %61 = vector.broadcast %60 : f32 to vector<8x128xf32>
    %62 = arith.mulf %61, %6 : vector<8x128xf32>
    %63 = arith.addf %59, %62 : vector<8x128xf32>
    %c11 = arith.constant 11 : index
    %64 = memref.load %arg2[%c11] : memref<12xf32, #tpu.memory_space<smem>>
    %65 = vector.broadcast %64 : f32 to vector<8x128xf32>
    %66 = arith.mulf %65, %8 : vector<8x128xf32>
    %67 = arith.addf %63, %66 : vector<8x128xf32>
    %cst_15 = arith.constant dense<0.000000e+00> : vector<128xf32>
    %68 = vector.multi_reduction <add>, %67, %cst_15 [0] : vector<8x128xf32> to vector<128xf32>
    %69 = vector.shape_cast %68 : vector<128xf32> to vector<1x128xf32>
    %70 = arith.mulf %67, %67 : vector<8x128xf32>
    %cst_16 = arith.constant dense<0.000000e+00> : vector<128xf32>
    %71 = vector.multi_reduction <add>, %70, %cst_16 [0] : vector<8x128xf32> to vector<128xf32>
    %72 = vector.shape_cast %71 : vector<128xf32> to vector<1x128xf32>
    %c0_17 = arith.constant 0 : index
    %c0_18 = arith.constant 0 : index
    %c0_19 = arith.constant 0 : index
    %73 = vector.load %arg4[%c0_17, %c0_18, %c0_19] : memref<1x8x128xf32, #tpu.memory_space<vmem>>, vector<1x8x128xf32>
    %74 = vector.shape_cast %73 : vector<1x8x128xf32> to vector<8x128xf32>
    %75 = tpu.concatenate %21, %37, %53, %69, %24, %40, %56, %72 in 0 : vector<1x128xf32>, vector<1x128xf32>, vector<1x128xf32>, vector<1x128xf32>, vector<1x128xf32>, vector<1x128xf32>, vector<1x128xf32>, vector<1x128xf32> -> vector<8x128xf32>
    %76 = arith.addf %74, %75 : vector<8x128xf32>
    %c0_20 = arith.constant 0 : index
    %c0_21 = arith.constant 0 : index
    %c0_22 = arith.constant 0 : index
    %77 = vector.load %arg4[%c0_20, %c0_21, %c0_22] : memref<1x8x128xf32, #tpu.memory_space<vmem>>, vector<1x8x128xf32>
    %78 = vector.shape_cast %77 : vector<1x8x128xf32> to vector<8x128xf32>
    %79 = vector.shape_cast %76 : vector<8x128xf32> to vector<1x8x128xf32>
    tpu.vector_store %arg4[%c0_20, %c0_21, %c0_22], %79 {strides = array<i32>} : memref<1x8x128xf32, #tpu.memory_space<vmem>>, vector<1x8x128xf32>,
    return
  }
  func.func @transform_0(%arg0: i32, %arg1: i32) -> i32 {
    %c0_i32 = arith.constant 0 : i32
    %c0_i32_0 = arith.constant 0 : i32
    return %c0_i32 : i32
  }
  func.func @transform_1(%arg0: i32, %arg1: i32) -> (i32, i32, i32) {
    %c1_i32 = arith.constant 1 : i32
    %0 = arith.muli %arg0, %c1_i32 : i32
    %1 = arith.addi %0, %arg1 : i32
    %c0_i32 = arith.constant 0 : i32
    %c0_i32_0 = arith.constant 0 : i32
    %c0_i32_1 = arith.constant 0 : i32
    return %c0_i32, %1, %c0_i32_0 : i32, i32, i32
  }
  func.func @transform_2(%arg0: i32, %arg1: i32) -> (i32, i32, i32) {
    %c0_i32 = arith.constant 0 : i32
    %c0_i32_0 = arith.constant 0 : i32
    %c0_i32_1 = arith.constant 0 : i32
    return %arg0, %c0_i32, %c0_i32_0 : i32, i32, i32
  }
}

module attributes {stable_mosaic.version = 11 : i64} {
  func.func @_mlp_fwd_kernel(%arg0: i32, %arg1: memref<46xf32, #tpu.memory_space<smem>>, %arg2: memref<3x8x128xf32, #tpu.memory_space<vmem>>, %arg3: memref<6x8x128xf32, #tpu.memory_space<vmem>>) attributes {dimension_semantics = [#tpu.dimension_semantics<parallel>], iteration_bounds = array<i64: 1>, scalar_prefetch = 0 : i64, scratch_operands = 0 : i64, tpu.core_type = #tpu.core_type<tc>, window_params = [{transform_indices = @transform_0, window_bounds = array<i64: 46>}, {transform_indices = @transform_1, window_bounds = array<i64: 3, 8, 128>}, {transform_indices = @transform_2, window_bounds = array<i64: 6, 8, 128>}]} {
    %c0 = arith.constant 0 : index
    %c0_0 = arith.constant 0 : index
    %c0_1 = arith.constant 0 : index
    %0 = vector.load %arg2[%c0, %c0_0, %c0_1] : memref<3x8x128xf32, #tpu.memory_space<vmem>>, vector<1x8x128xf32>
    %1 = vector.shape_cast %0 : vector<1x8x128xf32> to vector<8x128xf32>
    %c1 = arith.constant 1 : index
    %c0_2 = arith.constant 0 : index
    %c0_3 = arith.constant 0 : index
    %2 = vector.load %arg2[%c1, %c0_2, %c0_3] : memref<3x8x128xf32, #tpu.memory_space<vmem>>, vector<1x8x128xf32>
    %3 = vector.shape_cast %2 : vector<1x8x128xf32> to vector<8x128xf32>
    %c2 = arith.constant 2 : index
    %c0_4 = arith.constant 0 : index
    %c0_5 = arith.constant 0 : index
    %4 = vector.load %arg2[%c2, %c0_4, %c0_5] : memref<3x8x128xf32, #tpu.memory_space<vmem>>, vector<1x8x128xf32>
    %5 = vector.shape_cast %4 : vector<1x8x128xf32> to vector<8x128xf32>
    %c12 = arith.constant 12 : index
    %6 = memref.load %arg1[%c12] : memref<46xf32, #tpu.memory_space<smem>>
    %c0_6 = arith.constant 0 : index
    %7 = memref.load %arg1[%c0_6] : memref<46xf32, #tpu.memory_space<smem>>
    %8 = vector.broadcast %7 : f32 to vector<8x128xf32>
    %9 = arith.mulf %8, %1 : vector<8x128xf32>
    %10 = vector.broadcast %6 : f32 to vector<8x128xf32>
    %11 = arith.addf %10, %9 : vector<8x128xf32>
    %c1_7 = arith.constant 1 : index
    %12 = memref.load %arg1[%c1_7] : memref<46xf32, #tpu.memory_space<smem>>
    %13 = vector.broadcast %12 : f32 to vector<8x128xf32>
    %14 = arith.mulf %13, %3 : vector<8x128xf32>
    %15 = arith.addf %11, %14 : vector<8x128xf32>
    %c2_8 = arith.constant 2 : index
    %16 = memref.load %arg1[%c2_8] : memref<46xf32, #tpu.memory_space<smem>>
    %17 = vector.broadcast %16 : f32 to vector<8x128xf32>
    %18 = arith.mulf %17, %5 : vector<8x128xf32>
    %19 = arith.addf %15, %18 : vector<8x128xf32>
    %cst = arith.constant 0.000000e+00 : f32
    %20 = vector.broadcast %cst : f32 to vector<8x128xf32>
    %21 = arith.maximumf %19, %20 : vector<8x128xf32>
    %c13 = arith.constant 13 : index
    %22 = memref.load %arg1[%c13] : memref<46xf32, #tpu.memory_space<smem>>
    %c3 = arith.constant 3 : index
    %23 = memref.load %arg1[%c3] : memref<46xf32, #tpu.memory_space<smem>>
    %24 = vector.broadcast %23 : f32 to vector<8x128xf32>
    %25 = arith.mulf %24, %1 : vector<8x128xf32>
    %26 = vector.broadcast %22 : f32 to vector<8x128xf32>
    %27 = arith.addf %26, %25 : vector<8x128xf32>
    %c4 = arith.constant 4 : index
    %28 = memref.load %arg1[%c4] : memref<46xf32, #tpu.memory_space<smem>>
    %29 = vector.broadcast %28 : f32 to vector<8x128xf32>
    %30 = arith.mulf %29, %3 : vector<8x128xf32>
    %31 = arith.addf %27, %30 : vector<8x128xf32>
    %c5 = arith.constant 5 : index
    %32 = memref.load %arg1[%c5] : memref<46xf32, #tpu.memory_space<smem>>
    %33 = vector.broadcast %32 : f32 to vector<8x128xf32>
    %34 = arith.mulf %33, %5 : vector<8x128xf32>
    %35 = arith.addf %31, %34 : vector<8x128xf32>
    %cst_9 = arith.constant 0.000000e+00 : f32
    %36 = vector.broadcast %cst_9 : f32 to vector<8x128xf32>
    %37 = arith.maximumf %35, %36 : vector<8x128xf32>
    %c14 = arith.constant 14 : index
    %38 = memref.load %arg1[%c14] : memref<46xf32, #tpu.memory_space<smem>>
    %c6 = arith.constant 6 : index
    %39 = memref.load %arg1[%c6] : memref<46xf32, #tpu.memory_space<smem>>
    %40 = vector.broadcast %39 : f32 to vector<8x128xf32>
    %41 = arith.mulf %40, %1 : vector<8x128xf32>
    %42 = vector.broadcast %38 : f32 to vector<8x128xf32>
    %43 = arith.addf %42, %41 : vector<8x128xf32>
    %c7 = arith.constant 7 : index
    %44 = memref.load %arg1[%c7] : memref<46xf32, #tpu.memory_space<smem>>
    %45 = vector.broadcast %44 : f32 to vector<8x128xf32>
    %46 = arith.mulf %45, %3 : vector<8x128xf32>
    %47 = arith.addf %43, %46 : vector<8x128xf32>
    %c8 = arith.constant 8 : index
    %48 = memref.load %arg1[%c8] : memref<46xf32, #tpu.memory_space<smem>>
    %49 = vector.broadcast %48 : f32 to vector<8x128xf32>
    %50 = arith.mulf %49, %5 : vector<8x128xf32>
    %51 = arith.addf %47, %50 : vector<8x128xf32>
    %cst_10 = arith.constant 0.000000e+00 : f32
    %52 = vector.broadcast %cst_10 : f32 to vector<8x128xf32>
    %53 = arith.maximumf %51, %52 : vector<8x128xf32>
    %c15 = arith.constant 15 : index
    %54 = memref.load %arg1[%c15] : memref<46xf32, #tpu.memory_space<smem>>
    %c9 = arith.constant 9 : index
    %55 = memref.load %arg1[%c9] : memref<46xf32, #tpu.memory_space<smem>>
    %56 = vector.broadcast %55 : f32 to vector<8x128xf32>
    %57 = arith.mulf %56, %1 : vector<8x128xf32>
    %58 = vector.broadcast %54 : f32 to vector<8x128xf32>
    %59 = arith.addf %58, %57 : vector<8x128xf32>
    %c10 = arith.constant 10 : index
    %60 = memref.load %arg1[%c10] : memref<46xf32, #tpu.memory_space<smem>>
    %61 = vector.broadcast %60 : f32 to vector<8x128xf32>
    %62 = arith.mulf %61, %3 : vector<8x128xf32>
    %63 = arith.addf %59, %62 : vector<8x128xf32>
    %c11 = arith.constant 11 : index
    %64 = memref.load %arg1[%c11] : memref<46xf32, #tpu.memory_space<smem>>
    %65 = vector.broadcast %64 : f32 to vector<8x128xf32>
    %66 = arith.mulf %65, %5 : vector<8x128xf32>
    %67 = arith.addf %63, %66 : vector<8x128xf32>
    %cst_11 = arith.constant 0.000000e+00 : f32
    %68 = vector.broadcast %cst_11 : f32 to vector<8x128xf32>
    %69 = arith.maximumf %67, %68 : vector<8x128xf32>
    %c40 = arith.constant 40 : index
    %70 = memref.load %arg1[%c40] : memref<46xf32, #tpu.memory_space<smem>>
    %c16 = arith.constant 16 : index
    %71 = memref.load %arg1[%c16] : memref<46xf32, #tpu.memory_space<smem>>
    %72 = vector.broadcast %71 : f32 to vector<8x128xf32>
    %73 = arith.mulf %72, %21 : vector<8x128xf32>
    %74 = vector.broadcast %70 : f32 to vector<8x128xf32>
    %75 = arith.addf %74, %73 : vector<8x128xf32>
    %c17 = arith.constant 17 : index
    %76 = memref.load %arg1[%c17] : memref<46xf32, #tpu.memory_space<smem>>
    %77 = vector.broadcast %76 : f32 to vector<8x128xf32>
    %78 = arith.mulf %77, %37 : vector<8x128xf32>
    %79 = arith.addf %75, %78 : vector<8x128xf32>
    %c18 = arith.constant 18 : index
    %80 = memref.load %arg1[%c18] : memref<46xf32, #tpu.memory_space<smem>>
    %81 = vector.broadcast %80 : f32 to vector<8x128xf32>
    %82 = arith.mulf %81, %53 : vector<8x128xf32>
    %83 = arith.addf %79, %82 : vector<8x128xf32>
    %c19 = arith.constant 19 : index
    %84 = memref.load %arg1[%c19] : memref<46xf32, #tpu.memory_space<smem>>
    %85 = vector.broadcast %84 : f32 to vector<8x128xf32>
    %86 = arith.mulf %85, %69 : vector<8x128xf32>
    %87 = arith.addf %83, %86 : vector<8x128xf32>
    %cst_12 = arith.constant 0.000000e+00 : f32
    %88 = vector.broadcast %cst_12 : f32 to vector<8x128xf32>
    %89 = arith.maximumf %87, %88 : vector<8x128xf32>
    %c0_13 = arith.constant 0 : index
    %c0_14 = arith.constant 0 : index
    %c0_15 = arith.constant 0 : index
    %90 = vector.load %arg3[%c0_13, %c0_14, %c0_15] : memref<6x8x128xf32, #tpu.memory_space<vmem>>, vector<1x8x128xf32>
    %91 = vector.shape_cast %90 : vector<1x8x128xf32> to vector<8x128xf32>
    %92 = vector.shape_cast %89 : vector<8x128xf32> to vector<1x8x128xf32>
    tpu.vector_store %arg3[%c0_13, %c0_14, %c0_15], %92 {strides = array<i32>} : memref<6x8x128xf32, #tpu.memory_space<vmem>>, vector<1x8x128xf32>,
    %c41 = arith.constant 41 : index
    %93 = memref.load %arg1[%c41] : memref<46xf32, #tpu.memory_space<smem>>
    %c20 = arith.constant 20 : index
    %94 = memref.load %arg1[%c20] : memref<46xf32, #tpu.memory_space<smem>>
    %95 = vector.broadcast %94 : f32 to vector<8x128xf32>
    %96 = arith.mulf %95, %21 : vector<8x128xf32>
    %97 = vector.broadcast %93 : f32 to vector<8x128xf32>
    %98 = arith.addf %97, %96 : vector<8x128xf32>
    %c21 = arith.constant 21 : index
    %99 = memref.load %arg1[%c21] : memref<46xf32, #tpu.memory_space<smem>>
    %100 = vector.broadcast %99 : f32 to vector<8x128xf32>
    %101 = arith.mulf %100, %37 : vector<8x128xf32>
    %102 = arith.addf %98, %101 : vector<8x128xf32>
    %c22 = arith.constant 22 : index
    %103 = memref.load %arg1[%c22] : memref<46xf32, #tpu.memory_space<smem>>
    %104 = vector.broadcast %103 : f32 to vector<8x128xf32>
    %105 = arith.mulf %104, %53 : vector<8x128xf32>
    %106 = arith.addf %102, %105 : vector<8x128xf32>
    %c23 = arith.constant 23 : index
    %107 = memref.load %arg1[%c23] : memref<46xf32, #tpu.memory_space<smem>>
    %108 = vector.broadcast %107 : f32 to vector<8x128xf32>
    %109 = arith.mulf %108, %69 : vector<8x128xf32>
    %110 = arith.addf %106, %109 : vector<8x128xf32>
    %cst_16 = arith.constant 0.000000e+00 : f32
    %111 = vector.broadcast %cst_16 : f32 to vector<8x128xf32>
    %112 = arith.maximumf %110, %111 : vector<8x128xf32>
    %c1_17 = arith.constant 1 : index
    %c0_18 = arith.constant 0 : index
    %c0_19 = arith.constant 0 : index
    %113 = vector.load %arg3[%c1_17, %c0_18, %c0_19] : memref<6x8x128xf32, #tpu.memory_space<vmem>>, vector<1x8x128xf32>
    %114 = vector.shape_cast %113 : vector<1x8x128xf32> to vector<8x128xf32>
    %115 = vector.shape_cast %112 : vector<8x128xf32> to vector<1x8x128xf32>
    tpu.vector_store %arg3[%c1_17, %c0_18, %c0_19], %115 {strides = array<i32>} : memref<6x8x128xf32, #tpu.memory_space<vmem>>, vector<1x8x128xf32>,
    %c42 = arith.constant 42 : index
    %116 = memref.load %arg1[%c42] : memref<46xf32, #tpu.memory_space<smem>>
    %c24 = arith.constant 24 : index
    %117 = memref.load %arg1[%c24] : memref<46xf32, #tpu.memory_space<smem>>
    %118 = vector.broadcast %117 : f32 to vector<8x128xf32>
    %119 = arith.mulf %118, %21 : vector<8x128xf32>
    %120 = vector.broadcast %116 : f32 to vector<8x128xf32>
    %121 = arith.addf %120, %119 : vector<8x128xf32>
    %c25 = arith.constant 25 : index
    %122 = memref.load %arg1[%c25] : memref<46xf32, #tpu.memory_space<smem>>
    %123 = vector.broadcast %122 : f32 to vector<8x128xf32>
    %124 = arith.mulf %123, %37 : vector<8x128xf32>
    %125 = arith.addf %121, %124 : vector<8x128xf32>
    %c26 = arith.constant 26 : index
    %126 = memref.load %arg1[%c26] : memref<46xf32, #tpu.memory_space<smem>>
    %127 = vector.broadcast %126 : f32 to vector<8x128xf32>
    %128 = arith.mulf %127, %53 : vector<8x128xf32>
    %129 = arith.addf %125, %128 : vector<8x128xf32>
    %c27 = arith.constant 27 : index
    %130 = memref.load %arg1[%c27] : memref<46xf32, #tpu.memory_space<smem>>
    %131 = vector.broadcast %130 : f32 to vector<8x128xf32>
    %132 = arith.mulf %131, %69 : vector<8x128xf32>
    %133 = arith.addf %129, %132 : vector<8x128xf32>
    %cst_20 = arith.constant 0.000000e+00 : f32
    %134 = vector.broadcast %cst_20 : f32 to vector<8x128xf32>
    %135 = arith.maximumf %133, %134 : vector<8x128xf32>
    %c2_21 = arith.constant 2 : index
    %c0_22 = arith.constant 0 : index
    %c0_23 = arith.constant 0 : index
    %136 = vector.load %arg3[%c2_21, %c0_22, %c0_23] : memref<6x8x128xf32, #tpu.memory_space<vmem>>, vector<1x8x128xf32>
    %137 = vector.shape_cast %136 : vector<1x8x128xf32> to vector<8x128xf32>
    %138 = vector.shape_cast %135 : vector<8x128xf32> to vector<1x8x128xf32>
    tpu.vector_store %arg3[%c2_21, %c0_22, %c0_23], %138 {strides = array<i32>} : memref<6x8x128xf32, #tpu.memory_space<vmem>>, vector<1x8x128xf32>,
    %c43 = arith.constant 43 : index
    %139 = memref.load %arg1[%c43] : memref<46xf32, #tpu.memory_space<smem>>
    %c28 = arith.constant 28 : index
    %140 = memref.load %arg1[%c28] : memref<46xf32, #tpu.memory_space<smem>>
    %141 = vector.broadcast %140 : f32 to vector<8x128xf32>
    %142 = arith.mulf %141, %21 : vector<8x128xf32>
    %143 = vector.broadcast %139 : f32 to vector<8x128xf32>
    %144 = arith.addf %143, %142 : vector<8x128xf32>
    %c29 = arith.constant 29 : index
    %145 = memref.load %arg1[%c29] : memref<46xf32, #tpu.memory_space<smem>>
    %146 = vector.broadcast %145 : f32 to vector<8x128xf32>
    %147 = arith.mulf %146, %37 : vector<8x128xf32>
    %148 = arith.addf %144, %147 : vector<8x128xf32>
    %c30 = arith.constant 30 : index
    %149 = memref.load %arg1[%c30] : memref<46xf32, #tpu.memory_space<smem>>
    %150 = vector.broadcast %149 : f32 to vector<8x128xf32>
    %151 = arith.mulf %150, %53 : vector<8x128xf32>
    %152 = arith.addf %148, %151 : vector<8x128xf32>
    %c31 = arith.constant 31 : index
    %153 = memref.load %arg1[%c31] : memref<46xf32, #tpu.memory_space<smem>>
    %154 = vector.broadcast %153 : f32 to vector<8x128xf32>
    %155 = arith.mulf %154, %69 : vector<8x128xf32>
    %156 = arith.addf %152, %155 : vector<8x128xf32>
    %cst_24 = arith.constant 0.000000e+00 : f32
    %157 = vector.broadcast %cst_24 : f32 to vector<8x128xf32>
    %158 = arith.maximumf %156, %157 : vector<8x128xf32>
    %c3_25 = arith.constant 3 : index
    %c0_26 = arith.constant 0 : index
    %c0_27 = arith.constant 0 : index
    %159 = vector.load %arg3[%c3_25, %c0_26, %c0_27] : memref<6x8x128xf32, #tpu.memory_space<vmem>>, vector<1x8x128xf32>
    %160 = vector.shape_cast %159 : vector<1x8x128xf32> to vector<8x128xf32>
    %161 = vector.shape_cast %158 : vector<8x128xf32> to vector<1x8x128xf32>
    tpu.vector_store %arg3[%c3_25, %c0_26, %c0_27], %161 {strides = array<i32>} : memref<6x8x128xf32, #tpu.memory_space<vmem>>, vector<1x8x128xf32>,
    %c44 = arith.constant 44 : index
    %162 = memref.load %arg1[%c44] : memref<46xf32, #tpu.memory_space<smem>>
    %c32 = arith.constant 32 : index
    %163 = memref.load %arg1[%c32] : memref<46xf32, #tpu.memory_space<smem>>
    %164 = vector.broadcast %163 : f32 to vector<8x128xf32>
    %165 = arith.mulf %164, %21 : vector<8x128xf32>
    %166 = vector.broadcast %162 : f32 to vector<8x128xf32>
    %167 = arith.addf %166, %165 : vector<8x128xf32>
    %c33 = arith.constant 33 : index
    %168 = memref.load %arg1[%c33] : memref<46xf32, #tpu.memory_space<smem>>
    %169 = vector.broadcast %168 : f32 to vector<8x128xf32>
    %170 = arith.mulf %169, %37 : vector<8x128xf32>
    %171 = arith.addf %167, %170 : vector<8x128xf32>
    %c34 = arith.constant 34 : index
    %172 = memref.load %arg1[%c34] : memref<46xf32, #tpu.memory_space<smem>>
    %173 = vector.broadcast %172 : f32 to vector<8x128xf32>
    %174 = arith.mulf %173, %53 : vector<8x128xf32>
    %175 = arith.addf %171, %174 : vector<8x128xf32>
    %c35 = arith.constant 35 : index
    %176 = memref.load %arg1[%c35] : memref<46xf32, #tpu.memory_space<smem>>
    %177 = vector.broadcast %176 : f32 to vector<8x128xf32>
    %178 = arith.mulf %177, %69 : vector<8x128xf32>
    %179 = arith.addf %175, %178 : vector<8x128xf32>
    %cst_28 = arith.constant 0.000000e+00 : f32
    %180 = vector.broadcast %cst_28 : f32 to vector<8x128xf32>
    %181 = arith.maximumf %179, %180 : vector<8x128xf32>
    %c4_29 = arith.constant 4 : index
    %c0_30 = arith.constant 0 : index
    %c0_31 = arith.constant 0 : index
    %182 = vector.load %arg3[%c4_29, %c0_30, %c0_31] : memref<6x8x128xf32, #tpu.memory_space<vmem>>, vector<1x8x128xf32>
    %183 = vector.shape_cast %182 : vector<1x8x128xf32> to vector<8x128xf32>
    %184 = vector.shape_cast %181 : vector<8x128xf32> to vector<1x8x128xf32>
    tpu.vector_store %arg3[%c4_29, %c0_30, %c0_31], %184 {strides = array<i32>} : memref<6x8x128xf32, #tpu.memory_space<vmem>>, vector<1x8x128xf32>,
    %c45 = arith.constant 45 : index
    %185 = memref.load %arg1[%c45] : memref<46xf32, #tpu.memory_space<smem>>
    %c36 = arith.constant 36 : index
    %186 = memref.load %arg1[%c36] : memref<46xf32, #tpu.memory_space<smem>>
    %187 = vector.broadcast %186 : f32 to vector<8x128xf32>
    %188 = arith.mulf %187, %21 : vector<8x128xf32>
    %189 = vector.broadcast %185 : f32 to vector<8x128xf32>
    %190 = arith.addf %189, %188 : vector<8x128xf32>
    %c37 = arith.constant 37 : index
    %191 = memref.load %arg1[%c37] : memref<46xf32, #tpu.memory_space<smem>>
    %192 = vector.broadcast %191 : f32 to vector<8x128xf32>
    %193 = arith.mulf %192, %37 : vector<8x128xf32>
    %194 = arith.addf %190, %193 : vector<8x128xf32>
    %c38 = arith.constant 38 : index
    %195 = memref.load %arg1[%c38] : memref<46xf32, #tpu.memory_space<smem>>
    %196 = vector.broadcast %195 : f32 to vector<8x128xf32>
    %197 = arith.mulf %196, %53 : vector<8x128xf32>
    %198 = arith.addf %194, %197 : vector<8x128xf32>
    %c39 = arith.constant 39 : index
    %199 = memref.load %arg1[%c39] : memref<46xf32, #tpu.memory_space<smem>>
    %200 = vector.broadcast %199 : f32 to vector<8x128xf32>
    %201 = arith.mulf %200, %69 : vector<8x128xf32>
    %202 = arith.addf %198, %201 : vector<8x128xf32>
    %cst_32 = arith.constant 0.000000e+00 : f32
    %203 = vector.broadcast %cst_32 : f32 to vector<8x128xf32>
    %204 = arith.maximumf %202, %203 : vector<8x128xf32>
    %c5_33 = arith.constant 5 : index
    %c0_34 = arith.constant 0 : index
    %c0_35 = arith.constant 0 : index
    %205 = vector.load %arg3[%c5_33, %c0_34, %c0_35] : memref<6x8x128xf32, #tpu.memory_space<vmem>>, vector<1x8x128xf32>
    %206 = vector.shape_cast %205 : vector<1x8x128xf32> to vector<8x128xf32>
    %207 = vector.shape_cast %204 : vector<8x128xf32> to vector<1x8x128xf32>
    tpu.vector_store %arg3[%c5_33, %c0_34, %c0_35], %207 {strides = array<i32>} : memref<6x8x128xf32, #tpu.memory_space<vmem>>, vector<1x8x128xf32>,
    return
  }
  func.func @transform_0(%arg0: i32) -> i32 {
    %c0_i32 = arith.constant 0 : i32
    %c0_i32_0 = arith.constant 0 : i32
    return %c0_i32 : i32
  }
  func.func @transform_1(%arg0: i32) -> (i32, i32, i32) {
    %c0_i32 = arith.constant 0 : i32
    %c0_i32_0 = arith.constant 0 : i32
    %c0_i32_1 = arith.constant 0 : i32
    return %c0_i32, %arg0, %c0_i32_0 : i32, i32, i32
  }
  func.func @transform_2(%arg0: i32) -> (i32, i32, i32) {
    %c0_i32 = arith.constant 0 : i32
    %c0_i32_0 = arith.constant 0 : i32
    %c0_i32_1 = arith.constant 0 : i32
    return %c0_i32, %arg0, %c0_i32_0 : i32, i32, i32
  }
}

</mosaic_0001>

<llo_original>
// kernel: temp_mlp_forward.3
$region0: #{temp_mlp_forward.3}
  #allocation0 [shape = 'u32[]', space=smem, size = 0x4, offset = 0x4, fixed_abs, tag = 'smem constant byte address 0x4 - core index']
  #allocation1 [shape = 'u32[72,128]{1,0:T(1,128)}', space=vmem, size = 0x9000, scoped, tag = 'internal scratch']
  %s0 = inlined_call_operand.vmem [shape: f32[46], index: 0, kind: input, shape index: {}]
  %s1 = inlined_call_operand.vmem [shape: f32[3,8,128], index: 1, kind: input, shape index: {}]
  %s2 = inlined_call_operand.vmem [shape: f32[6,8,128], index: 2, kind: output, shape index: {}]
  %s3 = sld [smem:[#allocation0]]
  $region22: #{temp_mlp_forward.3} parent=0
    _
  %s5 = ssub.s32 1, %s3
  %s6 = scalar_select 0, %s5, %s3
  $region1: #{temp_mlp_forward.3} parent=0
    #allocation2 [shape = 'u8[512]{0}', space=smem, size = 0x200, scoped, tag = 'input window, operand 0, single buffered']
    #allocation3 [shape = 's32[1]{0}', space=sflag, size = 0x4, scoped, tag = 'scoped memory for temp_mlp_forward.3']
    %7 = vsyncpa [#allocation3], 0
    // Predicated region
    $region2: #{temp_mlp_forward.3} parent=1 // pred_check
      _
    $region3: #{temp_mlp_forward.3} parent=1 // pred_check_branch
      %9 = sbr.rel (0) target = $region5
    $region4: #{temp_mlp_forward.3} parent=1 // pred_region
      %11 = vsyncadd [#allocation3], 0
      %s13 = sshll.u32 %s0, 4
      %s14 = int_to_ptr.vmem [resolvable:$true] %s13
      %16 = dma.vmem_to_smem %s14, 16, [#allocation2], [#allocation3]
    $region5: #{temp_mlp_forward.3} parent=1 // pred_fallthru
      _
    // Predicated region
    $region6: #{temp_mlp_forward.3} parent=1 // pred_check
      _
    $region7: #{temp_mlp_forward.3} parent=1 // pred_check_branch
      %18 = sbr.rel (0) target = $region9
    $region8: #{temp_mlp_forward.3} parent=1 // pred_region
      _
    $region9: #{temp_mlp_forward.3} parent=1 // pred_fallthru
      _
    // Predicated region
    $region10: #{temp_mlp_forward.3} parent=1 // pred_check
      _
    $region11: #{temp_mlp_forward.3} parent=1 // pred_check_branch
      %20 = sbr.rel (0) target = $region13
    $region12: #{temp_mlp_forward.3} parent=1 // pred_region
      %22 = dma.done [#allocation3], 16
    $region13: #{temp_mlp_forward.3} parent=1 // pred_fallthru
      _
    %23 = sfence
    %v24 = vld [vmem:[%s1] sm:$0xff]
    %s25 = scalar_lea.vmem %s1, 8
    %v26 = vld [vmem:[%s25] sm:$0xff]
    %s27 = scalar_lea.vmem %s1, 16
    %v28 = vld [vmem:[%s27] sm:$0xff]
    %s29 = sld [smem:[#allocation2 + $0xc]]
    %s30 = sld [smem:[#allocation2]]
    %v31 = vstv %s30
    %v32 = vmul.f32 %v31, %v24
    %v33 = vstv %s29
    %v34 = vadd.f32 %v33, %v32
    %s35 = sld [smem:[#allocation2 + $0x1]]
    %v36 = vstv %s35
    %v37 = vmul.f32 %v36, %v26
    %v38 = vadd.f32 %v34, %v37
    %s39 = sld [smem:[#allocation2 + $0x2]]
    %v40 = vstv %s39
    %v41 = vmul.f32 %v40, %v28
    %v42 = vadd.f32 %v38, %v41
    %v43 = vmax.f32 %v42, 0.0
    %s44 = sld [smem:[#allocation2 + $0xd]]
    %s45 = sld [smem:[#allocation2 + $0x3]]
    %v46 = vstv %s45
    %v47 = vmul.f32 %v46, %v24
    %v48 = vstv %s44
    %v49 = vadd.f32 %v48, %v47
    %s50 = sld [smem:[#allocation2 + $0x4]]
    %v51 = vstv %s50
    %v52 = vmul.f32 %v51, %v26
    %v53 = vadd.f32 %v49, %v52
    %s54 = sld [smem:[#allocation2 + $0x5]]
    %v55 = vstv %s54
    %v56 = vmul.f32 %v55, %v28
    %v57 = vadd.f32 %v53, %v56
    %v58 = vmax.f32 %v57, 0.0
    %s59 = sld [smem:[#allocation2 + $0xe]]
    %s60 = sld [smem:[#allocation2 + $0x6]]
    %v61 = vstv %s60
    %v62 = vmul.f32 %v61, %v24
    %v63 = vstv %s59
    %v64 = vadd.f32 %v63, %v62
    %s65 = sld [smem:[#allocation2 + $0x7]]
    %v66 = vstv %s65
    %v67 = vmul.f32 %v66, %v26
    %v68 = vadd.f32 %v64, %v67
    %s69 = sld [smem:[#allocation2 + $0x8]]
    %v70 = vstv %s69
    %v71 = vmul.f32 %v70, %v28
    %v72 = vadd.f32 %v68, %v71
    %v73 = vmax.f32 %v72, 0.0
    %s74 = sld [smem:[#allocation2 + $0xf]]
    %s75 = sld [smem:[#allocation2 + $0x9]]
    %v76 = vstv %s75
    %v77 = vmul.f32 %v76, %v24
    %v78 = vstv %s74
    %v79 = vadd.f32 %v78, %v77
    %s80 = sld [smem:[#allocation2 + $0xa]]
    %v81 = vstv %s80
    %v82 = vmul.f32 %v81, %v26
    %v83 = vadd.f32 %v79, %v82
    %s84 = sld [smem:[#allocation2 + $0xb]]
    %v85 = vstv %s84
    %v86 = vmul.f32 %v85, %v28
    %v87 = vadd.f32 %v83, %v86
    %v88 = vmax.f32 %v87, 0.0
    %s89 = sld [smem:[#allocation2 + $0x28]]
    %s90 = sld [smem:[#allocation2 + $0x10]]
    %v91 = vstv %s90
    %v92 = vmul.f32 %v91, %v43
    %v93 = vstv %s89
    %v94 = vadd.f32 %v93, %v92
    %s95 = sld [smem:[#allocation2 + $0x11]]
    %v96 = vstv %s95
    %v97 = vmul.f32 %v96, %v58
    %v98 = vadd.f32 %v94, %v97
    %s99 = sld [smem:[#allocation2 + $0x12]]
    %v100 = vstv %s99
    %v101 = vmul.f32 %v100, %v73
    %v102 = vadd.f32 %v98, %v101
    %s103 = sld [smem:[#allocation2 + $0x13]]
    %v104 = vstv %s103
    %v105 = vmul.f32 %v104, %v88
    %v106 = vadd.f32 %v102, %v105
    %v107 = vmax.f32 %v106, 0.0
    %108 = vst [vmem:[%s2] sm:$0xff] %v107
    %s109 = sld [smem:[#allocation2 + $0x29]]
    %s110 = sld [smem:[#allocation2 + $0x14]]
    %v111 = vstv %s110
    %v112 = vmul.f32 %v111, %v43
    %v113 = vstv %s109
    %v114 = vadd.f32 %v113, %v112
    %s115 = sld [smem:[#allocation2 + $0x15]]
    %v116 = vstv %s115
    %v117 = vmul.f32 %v116, %v58
    %v118 = vadd.f32 %v114, %v117
    %s119 = sld [smem:[#allocation2 + $0x16]]
    %v120 = vstv %s119
    %v121 = vmul.f32 %v120, %v73
    %v122 = vadd.f32 %v118, %v121
    %s123 = sld [smem:[#allocation2 + $0x17]]
    %v124 = vstv %s123
    %v125 = vmul.f32 %v124, %v88
    %v126 = vadd.f32 %v122, %v125
    %v127 = vmax.f32 %v126, 0.0
    %s128 = scalar_lea.vmem %s2, 8
    %129 = vst [vmem:[%s128] sm:$0xff] %v127
    %s130 = sld [smem:[#allocation2 + $0x2a]]
    %s131 = sld [smem:[#allocation2 + $0x18]]
    %v132 = vstv %s131
    %v133 = vmul.f32 %v132, %v43
    %v134 = vstv %s130
    %v135 = vadd.f32 %v134, %v133
    %s136 = sld [smem:[#allocation2 + $0x19]]
    %v137 = vstv %s136
    %v138 = vmul.f32 %v137, %v58
    %v139 = vadd.f32 %v135, %v138
    %s140 = sld [smem:[#allocation2 + $0x1a]]
    %v141 = vstv %s140
    %v142 = vmul.f32 %v141, %v73
    %v143 = vadd.f32 %v139, %v142
    %s144 = sld [smem:[#allocation2 + $0x1b]]
    %v145 = vstv %s144
    %v146 = vmul.f32 %v145, %v88
    %v147 = vadd.f32 %v143, %v146
    %v148 = vmax.f32 %v147, 0.0
    %s149 = scalar_lea.vmem %s2, 16
    %150 = vst [vmem:[%s149] sm:$0xff] %v148
    %s151 = sld [smem:[#allocation2 + $0x2b]]
    %s152 = sld [smem:[#allocation2 + $0x1c]]
    %v153 = vstv %s152
    %v154 = vmul.f32 %v153, %v43
    %v155 = vstv %s151
    %v156 = vadd.f32 %v155, %v154
    %s157 = sld [smem:[#allocation2 + $0x1d]]
    %v158 = vstv %s157
    %v159 = vmul.f32 %v158, %v58
    %v160 = vadd.f32 %v156, %v159
    %s161 = sld [smem:[#allocation2 + $0x1e]]
    %v162 = vstv %s161
    %v163 = vmul.f32 %v162, %v73
    %v164 = vadd.f32 %v160, %v163
    %s165 = sld [smem:[#allocation2 + $0x1f]]
    %v166 = vstv %s165
    %v167 = vmul.f32 %v166, %v88
    %v168 = vadd.f32 %v164, %v167
    %v169 = vmax.f32 %v168, 0.0
    %s170 = scalar_lea.vmem %s2, 24
    %171 = vst [vmem:[%s170] sm:$0xff] %v169
    %s172 = sld [smem:[#allocation2 + $0x2c]]
    %s173 = sld [smem:[#allocation2 + $0x20]]
    %v174 = vstv %s173
    %v175 = vmul.f32 %v174, %v43
    %v176 = vstv %s172
    %v177 = vadd.f32 %v176, %v175
    %s178 = sld [smem:[#allocation2 + $0x21]]
    %v179 = vstv %s178
    %v180 = vmul.f32 %v179, %v58
    %v181 = vadd.f32 %v177, %v180
    %s182 = sld [smem:[#allocation2 + $0x22]]
    %v183 = vstv %s182
    %v184 = vmul.f32 %v183, %v73
    %v185 = vadd.f32 %v181, %v184
    %s186 = sld [smem:[#allocation2 + $0x23]]
    %v187 = vstv %s186
    %v188 = vmul.f32 %v187, %v88
    %v189 = vadd.f32 %v185, %v188
    %v190 = vmax.f32 %v189, 0.0
    %s191 = scalar_lea.vmem %s2, 32
    %192 = vst [vmem:[%s191] sm:$0xff] %v190
    %s193 = sld [smem:[#allocation2 + $0x2d]]
    %s194 = sld [smem:[#allocation2 + $0x24]]
    %v195 = vstv %s194
    %v196 = vmul.f32 %v195, %v43
    %v197 = vstv %s193
    %v198 = vadd.f32 %v197, %v196
    %s199 = sld [smem:[#allocation2 + $0x25]]
    %v200 = vstv %s199
    %v201 = vmul.f32 %v200, %v58
    %v202 = vadd.f32 %v198, %v201
    %s203 = sld [smem:[#allocation2 + $0x26]]
    %v204 = vstv %s203
    %v205 = vmul.f32 %v204, %v73
    %v206 = vadd.f32 %v202, %v205
    %s207 = sld [smem:[#allocation2 + $0x27]]
    %v208 = vstv %s207
    %v209 = vmul.f32 %v208, %v88
    %v210 = vadd.f32 %v206, %v209
    %v211 = vmax.f32 %v210, 0.0
    %s212 = scalar_lea.vmem %s2, 40
    %213 = vst [vmem:[%s212] sm:$0xff] %v211
    // Predicated region
    $region14: #{temp_mlp_forward.3} parent=1 // pred_check
      _
    $region15: #{temp_mlp_forward.3} parent=1 // pred_check_branch
      %215 = sbr.rel (0) target = $region17
    $region16: #{temp_mlp_forward.3} parent=1 // pred_region
      _
    $region17: #{temp_mlp_forward.3} parent=1 // pred_fallthru
      _
    // Predicated region
    $region18: #{temp_mlp_forward.3} parent=1 // pred_check
      _
    $region19: #{temp_mlp_forward.3} parent=1 // pred_check_branch
      %217 = sbr.rel (0) target = $region21
    $region20: #{temp_mlp_forward.3} parent=1 // pred_region
      _
    $region21: #{temp_mlp_forward.3} parent=1 // pred_fallthru
      _
    %218 = vsyncpa [#allocation3], 1

// kernel: temp_mlp_forward.2
$region0: #{temp_mlp_forward.2}
  #allocation0 [shape = 'u32[]', space=smem, size = 0x4, offset = 0x4, fixed_abs, tag = 'smem constant byte address 0x4 - core index']
  #allocation1 [shape = 'u32[72,128]{1,0:T(1,128)}', space=vmem, size = 0x9000, scoped, tag = 'internal scratch']
  %s0 = inlined_call_operand.vmem [shape: f32[12], index: 0, kind: input, shape index: {}]
  %s1 = inlined_call_operand.vmem [shape: f32[3,8,128], index: 1, kind: input, shape index: {}]
  %s2 = inlined_call_operand.vmem [shape: f32[1,8,128], index: 2, kind: output, shape index: {}]
  %s3 = sld [smem:[#allocation0]]
  $region26: #{temp_mlp_forward.2} parent=0
    _
  %s5 = ssub.s32 1, %s3
  %s6 = scalar_select 0, %s5, %s3
  $region1: #{temp_mlp_forward.2} parent=0
    #allocation2 [shape = 'u8[512]{0}', space=smem, size = 0x200, scoped, tag = 'input window, operand 0, single buffered']
    #allocation3 [shape = 's32[1]{0}', space=sflag, size = 0x4, scoped, tag = 'scoped memory for temp_mlp_forward.2']
    %7 = vsyncpa [#allocation3], 0
    // Predicated region
    $region2: #{temp_mlp_forward.2} parent=1 // pred_check
      _
    $region3: #{temp_mlp_forward.2} parent=1 // pred_check_branch
      %9 = sbr.rel (0) target = $region5
    $region4: #{temp_mlp_forward.2} parent=1 // pred_region
      %11 = vsyncadd [#allocation3], 0
      %s13 = sshll.u32 %s0, 4
      %s14 = int_to_ptr.vmem [resolvable:$true] %s13
      %16 = dma.vmem_to_smem %s14, 16, [#allocation2], [#allocation3]
    $region5: #{temp_mlp_forward.2} parent=1 // pred_fallthru
      _
    // Predicated region
    $region6: #{temp_mlp_forward.2} parent=1 // pred_check
      _
    $region7: #{temp_mlp_forward.2} parent=1 // pred_check_branch
      %18 = sbr.rel (0) target = $region9
    $region8: #{temp_mlp_forward.2} parent=1 // pred_region
      %s19 = sadd.s32 0, 0
      %p20 = scmp.lt.s32.totalorder %s19, 0
      %s21 = scalar_select %p20, %s19, 0
      %s22 = smul.addr %s21, 8
      %s23 = scalar_lea.vmem %s1, %s22
      %s24 = sadd.s32 0, 0
    $region9: #{temp_mlp_forward.2} parent=1 // pred_fallthru
      _
    // Predicated region
    $region10: #{temp_mlp_forward.2} parent=1 // pred_check
      _
    $region11: #{temp_mlp_forward.2} parent=1 // pred_check_branch
      %26 = sbr.rel (0) target = $region13
    $region12: #{temp_mlp_forward.2} parent=1 // pred_region
      %28 = dma.done [#allocation3], 16
    $region13: #{temp_mlp_forward.2} parent=1 // pred_fallthru
      _
    %29 = sfence
    %s30 = sadd.s32 0, 0
    %p31 = scmp.lt.s32.totalorder %s30, 0
    %s32 = scalar_select %p31, %s30, 0
    %s33 = smul.addr %s32, 8
    %s34 = scalar_lea.vmem %s1, %s33
    %s35 = sadd.s32 0, 0
    %p36 = scmp.lt.s32.totalorder %s35, 0
    %s37 = scalar_select %p36, %s35, 0
    %s38 = smul.addr %s37, 8
    %s39 = scalar_lea.vmem %s1, %s38
    %s40 = sadd.s32 0, 0
    %p41 = scmp.eq.s32.totalorder 0, 0
    // Predicated region
    $region14: #{temp_mlp_forward.2} parent=1 // pred_check
      %p42 = pneg %p41
    $region15: #{temp_mlp_forward.2} parent=1 // pred_check_branch
      %44 = sbr.rel (%p42) target = $region17
    $region16: #{temp_mlp_forward.2} parent=1 // pred_region
      %45 = vst [vmem:[%s2] sm:$0xff] 0.0
    $region17: #{temp_mlp_forward.2} parent=1 // pred_fallthru
      _
    %v46 = vld [vmem:[%s39] sm:$0xff]
    %s47 = scalar_lea.vmem %s39, 8
    %v48 = vld [vmem:[%s47] sm:$0xff]
    %s49 = scalar_lea.vmem %s39, 16
    %v50 = vld [vmem:[%s49] sm:$0xff]
    %s51 = sld [smem:[#allocation2]]
    %v52 = vstv %s51
    %v53 = vmul.f32 %v52, %v46
    %s54 = sld [smem:[#allocation2 + $0x1]]
    %v55 = vstv %s54
    %v56 = vmul.f32 %v55, %v48
    %v57 = vadd.f32 %v53, %v56
    %s58 = sld [smem:[#allocation2 + $0x2]]
    %v59 = vstv %s58
    %v60 = vmul.f32 %v59, %v50
    %v61 = vadd.f32 %v57, %v60
    %v62 = vrot.slane %v61, 4
    %v63 = vadd.f32 %v61, %v62
    %v64 = vrot.slane %v63, 2
    %v65 = vadd.f32 %v63, %v64
    %v66 = vrot.slane %v65, 1
    %v67 = vadd.f32 %v65, %v66
    %v68 = vmul.f32 %v61, %v61
    %v69 = vrot.slane %v68, 4
    %v70 = vadd.f32 %v68, %v69
    %v71 = vrot.slane %v70, 2
    %v72 = vadd.f32 %v70, %v71
    %v73 = vrot.slane %v72, 1
    %v74 = vadd.f32 %v72, %v73
    %s75 = sld [smem:[#allocation2 + $0x3]]
    %v76 = vstv %s75
    %v77 = vmul.f32 %v76, %v46
    %s78 = sld [smem:[#allocation2 + $0x4]]
    %v79 = vstv %s78
    %v80 = vmul.f32 %v79, %v48
    %v81 = vadd.f32 %v77, %v80
    %s82 = sld [smem:[#allocation2 + $0x5]]
    %v83 = vstv %s82
    %v84 = vmul.f32 %v83, %v50
    %v85 = vadd.f32 %v81, %v84
    %v86 = vrot.slane %v85, 4
    %v87 = vadd.f32 %v85, %v86
    %v88 = vrot.slane %v87, 2
    %v89 = vadd.f32 %v87, %v88
    %v90 = vrot.slane %v89, 1
    %v91 = vadd.f32 %v89, %v90
    %v92 = vmul.f32 %v85, %v85
    %v93 = vrot.slane %v92, 4
    %v94 = vadd.f32 %v92, %v93
    %v95 = vrot.slane %v94, 2
    %v96 = vadd.f32 %v94, %v95
    %v97 = vrot.slane %v96, 1
    %v98 = vadd.f32 %v96, %v97
    %s99 = sld [smem:[#allocation2 + $0x6]]
    %v100 = vstv %s99
    %v101 = vmul.f32 %v100, %v46
    %s102 = sld [smem:[#allocation2 + $0x7]]
    %v103 = vstv %s102
    %v104 = vmul.f32 %v103, %v48
    %v105 = vadd.f32 %v101, %v104
    %s106 = sld [smem:[#allocation2 + $0x8]]
    %v107 = vstv %s106
    %v108 = vmul.f32 %v107, %v50
    %v109 = vadd.f32 %v105, %v108
    %v110 = vrot.slane %v109, 4
    %v111 = vadd.f32 %v109, %v110
    %v112 = vrot.slane %v111, 2
    %v113 = vadd.f32 %v111, %v112
    %v114 = vrot.slane %v113, 1
    %v115 = vadd.f32 %v113, %v114
    %v116 = vmul.f32 %v109, %v109
    %v117 = vrot.slane %v116, 4
    %v118 = vadd.f32 %v116, %v117
    %v119 = vrot.slane %v118, 2
    %v120 = vadd.f32 %v118, %v119
    %v121 = vrot.slane %v120, 1
    %v122 = vadd.f32 %v120, %v121
    %s123 = sld [smem:[#allocation2 + $0x9]]
    %v124 = vstv %s123
    %v125 = vmul.f32 %v124, %v46
    %s126 = sld [smem:[#allocation2 + $0xa]]
    %v127 = vstv %s126
    %v128 = vmul.f32 %v127, %v48
    %v129 = vadd.f32 %v125, %v128
    %s130 = sld [smem:[#allocation2 + $0xb]]
    %v131 = vstv %s130
    %v132 = vmul.f32 %v131, %v50
    %v133 = vadd.f32 %v129, %v132
    %v134 = vrot.slane %v133, 4
    %v135 = vadd.f32 %v133, %v134
    %v136 = vrot.slane %v135, 2
    %v137 = vadd.f32 %v135, %v136
    %v138 = vrot.slane %v137, 1
    %v139 = vadd.f32 %v137, %v138
    %v140 = vmul.f32 %v133, %v133
    %v141 = vrot.slane %v140, 4
    %v142 = vadd.f32 %v140, %v141
    %v143 = vrot.slane %v142, 2
    %v144 = vadd.f32 %v142, %v143
    %v145 = vrot.slane %v144, 1
    %v146 = vadd.f32 %v144, %v145
    %v147 = vld [vmem:[%s2] sm:$0xff]
    %vm148 = vcmask 1040384
    %v149 = vsel %vm148, %v67, %v91
    %vm150 = vcmask 1041408
    %v151 = vsel %vm150, %v149, %v115
    %vm152 = vcmask 1042432
    %v153 = vsel %vm152, %v151, %v139
    %vm154 = vcmask 1043456
    %v155 = vsel %vm154, %v153, %v74
    %vm156 = vcmask 1044480
    %v157 = vsel %vm156, %v155, %v98
    %vm158 = vcmask 1045504
    %v159 = vsel %vm158, %v157, %v122
    %vm160 = vcmask 1046528
    %v161 = vsel %vm160, %v159, %v146
    %v162 = vadd.f32 %v147, %v161
    %163 = vst [vmem:[%s2] sm:$0xff] %v162
    // Predicated region
    $region18: #{temp_mlp_forward.2} parent=1 // pred_check
      _
    $region19: #{temp_mlp_forward.2} parent=1 // pred_check_branch
      %165 = sbr.rel (0) target = $region21
    $region20: #{temp_mlp_forward.2} parent=1 // pred_region
      _
    $region21: #{temp_mlp_forward.2} parent=1 // pred_fallthru
      _
    // Predicated region
    $region22: #{temp_mlp_forward.2} parent=1 // pred_check
      _
    $region23: #{temp_mlp_forward.2} parent=1 // pred_check_branch
      %167 = sbr.rel (0) target = $region25
    $region24: #{temp_mlp_forward.2} parent=1 // pred_region
      _
    $region25: #{temp_mlp_forward.2} parent=1 // pred_fallthru
      _
    %168 = vsyncpa [#allocation3], 1

</llo_original>
